<compile_context>
chip_gen: v7x
topology: tpu7x:2x2x1
jax: 0.10.0
libtpu: 0.0.40
codegen_flags: <defaults>
</compile_context>

<pallas_src>
import math

import jax
import jax.numpy as jnp
from jax.experimental import pallas as pl
from jax.experimental.pallas import tpu as pltpu


def _pair(x):
    if isinstance(x, (tuple, list)):
        return tuple(x)
    return (x, x)


# Budget for the double-buffered (input + output) tiles of a single grid step.
# Conservative so it is safe on v7x (64 MiB physical VMEM, 32 MiB scoped
# default) while still batching thousands of typical feature-map planes.
_TILE_BUDGET_BYTES = 12 * 1024 * 1024
_VMEM_LIMIT_BYTES = 32 * 1024 * 1024


class ValidPad2dPallas:
    """Pallas equivalent of ValidPad2d: pads (or crops, for negative pads)
    the NCHW input so a conv with `kernel_size`/`stride` consumes it exactly."""

    def __init__(self, kernel_size, stride, mode="constant", value=0.0):
        self.kernel_size = _pair(kernel_size)
        self.stride = _pair(stride)
        self.mode = mode
        self.value = value
        if mode != "constant":
            # TODO(synk): only 'constant' mode implemented (reflect/replicate/circular not ported).
            raise NotImplementedError("only mode='constant' is supported")

    def _pads(self, h, w):
        (k1, k2), (s1, s2) = self.kernel_size, self.stride
        h_pad = s1 * math.ceil((h - k1 + 1) / s1 - 1) + k1 - h
        w_pad = s2 * math.ceil((w - k2 + 1) / s2 - 1) + k2 - w
        top, bottom = (math.floor(h_pad / 2), math.ceil(h_pad / 2)) if h_pad else (0, 0)
        left, right = (math.floor(w_pad / 2), math.ceil(w_pad / 2)) if w_pad else (0, 0)
        return top, bottom, left, right

    def __call__(self, x):
        n, c, h, w = x.shape
        top, bottom, left, right = self._pads(h, w)
        if (top, bottom, left, right) == (0, 0, 0, 0):
            return x  # nothing to do

        h_out = h + top + bottom
        w_out = w + left + right
        assert h_out > 0 and w_out > 0, "ValidPad2d crops the input to nothing"

        # Static src/dst offsets and copy extents (F.pad 'constant' semantics:
        # positive pad -> border filled with `value`; negative pad -> crop).
        dst_r, src_r = max(top, 0), max(-top, 0)
        dst_c, src_c = max(left, 0), max(-left, 0)
        h_eff = h + min(top, 0) + min(bottom, 0)
        w_eff = w + min(left, 0) + min(right, 0)
        value = self.value
        nc = n * c
        itemsize = jnp.dtype(x.dtype).itemsize

        # Planes per grid step: largest count whose double-buffered input +
        # output tiles stay under the VMEM budget.
        per_plane = (h * w + h_out * w_out) * itemsize
        tnc = max(1, _TILE_BUDGET_BYTES // (2 * per_plane))
        tnc = min(tnc, nc)

        # ---------------- lane-dense flattened path (no W pad/crop) ---------
        use_flat = (left == 0 and right == 0) and (tnc >= 8 or tnc >= nc)
        if use_flat:
            # Flatten H*W onto the lane axis: dense vld/vst, H pad/crop is one
            # contiguous slab copy.  Block sublane dim must be a multiple of 8
            # or the full extent.
            tnc = nc if tnc >= nc else (tnc // 8) * 8

            def pad_kernel_flat(x_ref, o_ref):
                blk = o_ref.shape[0]
                if top > 0:
                    o_ref[:, : dst_r * w] = jnp.full(
                        (blk, dst_r * w), value, o_ref.dtype)
                if bottom > 0:
                    o_ref[:, (dst_r + h_eff) * w:] = jnp.full(
                        (blk, bottom * w), value, o_ref.dtype)
                o_ref[:, dst_r * w: (dst_r + h_eff) * w] = (
                    x_ref[:, src_r * w: (src_r + h_eff) * w])

            x_flat = x.reshape(nc, h * w)
            out_flat = pl.pallas_call(
                pad_kernel_flat,
                out_shape=jax.ShapeDtypeStruct((nc, h_out * w), x.dtype),
                grid_spec=pltpu.PrefetchScalarGridSpec(
                    num_scalar_prefetch=0,
                    grid=(pl.cdiv(nc, tnc),),
                    in_specs=[pl.BlockSpec((tnc, h * w), lambda i: (i, 0))],
                    out_specs=pl.BlockSpec((tnc, h_out * w), lambda i: (i, 0)),
                ),
                compiler_params=pltpu.CompilerParams(
                    dimension_semantics=("parallel",),
                    vmem_limit_bytes=_VMEM_LIMIT_BYTES),
            )(x_flat)
            return out_flat.reshape(n, c, h_out, w_out)

        # ---------------- general path: pad/crop on H and W -----------------
        # Keep at least 2 grid steps when possible so the 'parallel' axis can
        # still be split across both TensorCores (v7x megacore).
        if tnc >= nc and nc >= 2:
            tnc = pl.cdiv(nc, 2)

        def pad_kernel(x_ref, o_ref):
            blk = o_ref.shape[0]
            # Fill only the border strips -- never store the interior twice.
            if top > 0:
                o_ref[:, :dst_r, :] = jnp.full(
                    (blk, dst_r, w_out), value, o_ref.dtype)
            if bottom > 0:
                o_ref[:, dst_r + h_eff:, :] = jnp.full(
                    (blk, bottom, w_out), value, o_ref.dtype)
            if left > 0:
                o_ref[:, dst_r:dst_r + h_eff, :dst_c] = jnp.full(
                    (blk, h_eff, dst_c), value, o_ref.dtype)
            if right > 0:
                o_ref[:, dst_r:dst_r + h_eff, dst_c + w_eff:] = jnp.full(
                    (blk, h_eff, right), value, o_ref.dtype)
            o_ref[:, dst_r:dst_r + h_eff, dst_c:dst_c + w_eff] = (
                x_ref[:, src_r:src_r + h_eff, src_c:src_c + w_eff])

        x_flat = x.reshape(nc, h, w)
        out_flat = pl.pallas_call(
            pad_kernel,
            out_shape=jax.ShapeDtypeStruct((nc, h_out, w_out), x.dtype),
            grid_spec=pltpu.PrefetchScalarGridSpec(
                num_scalar_prefetch=0,
                grid=(pl.cdiv(nc, tnc),),
                in_specs=[pl.BlockSpec((tnc, h, w), lambda i: (i, 0, 0))],
                out_specs=pl.BlockSpec((tnc, h_out, w_out), lambda i: (i, 0, 0)),
            ),
            compiler_params=pltpu.CompilerParams(
                dimension_semantics=("parallel",),
                vmem_limit_bytes=_VMEM_LIMIT_BYTES),
        )(x_flat)
        return out_flat.reshape(n, c, h_out, w_out)


def _reference_valid_pad(x, pads, value):
    """Pure-JAX reference matching F.pad(constant) incl. negative pads."""
    top, bottom, left, right = pads
    n, c, h, w = x.shape
    xc = x[:, :,
           max(-top, 0): h - max(-bottom, 0),
           max(-left, 0): w - max(-right, 0)]
    return jnp.pad(
        xc,
        ((0, 0), (0, 0),
         (max(top, 0), max(bottom, 0)),
         (max(left, 0), max(right, 0))),
        mode="constant", constant_values=value,
    )


if __name__ == "__main__":
    key = jax.random.PRNGKey(0)
    x = jax.random.normal(key, (2, 4, 16, 16), dtype=jnp.float32)

    # Case 1: crop on both H and W (general batched path).
    mod = ValidPad2dPallas(kernel_size=3, stride=2, mode="constant", value=0.0)
    out = jax.block_until_ready(mod(x))
    ref = _reference_valid_pad(x, mod._pads(16, 16), 0.0)
    assert out.shape == ref.shape, (out.shape, ref.shape)
    assert out.dtype == ref.dtype, (out.dtype, ref.dtype)
    assert jnp.allclose(out, ref), "Pallas ValidPad2d mismatch vs reference (HW crop)"

    # Case 2: crop on H only -> lane-dense flattened path.
    mod2 = ValidPad2dPallas(kernel_size=(3, 1), stride=(2, 1))
    out2 = jax.block_until_ready(mod2(x))
    ref2 = _reference_valid_pad(x, mod2._pads(16, 16), 0.0)
    assert out2.shape == ref2.shape, (out2.shape, ref2.shape)
    assert jnp.allclose(out2, ref2), "Pallas ValidPad2d mismatch vs reference (H-only crop)"

    print("KERNEL_OK")
</pallas_src>

<mosaic_0001>
module attributes {stable_mosaic.version = 11 : i64} {
  func.func @pad_kernel(%arg0: i32, %arg1: memref<4x16x16xf32, #tpu.memory_space<vmem>>, %arg2: memref<4x15x15xf32, #tpu.memory_space<vmem>>) attributes {dimension_semantics = [#tpu.dimension_semantics<parallel>], iteration_bounds = array<i64: 2>, scalar_prefetch = 0 : i64, scratch_operands = 0 : i64, tpu.core_type = #tpu.core_type<tc>, window_params = [{transform_indices = @transform_0, window_bounds = array<i64: 4, 16, 16>}, {transform_indices = @transform_1, window_bounds = array<i64: 4, 15, 15>}]} {
    %c0 = arith.constant 0 : index
    %c1 = arith.constant 1 : index
    %c1_0 = arith.constant 1 : index
    %0 = vector.load %arg1[%c0, %c1, %c1_0] : memref<4x16x16xf32, #tpu.memory_space<vmem>>, vector<4x15x15xf32>
    %c0_1 = arith.constant 0 : index
    %c0_2 = arith.constant 0 : index
    %c0_3 = arith.constant 0 : index
    %1 = vector.load %arg2[%c0_1, %c0_2, %c0_3] : memref<4x15x15xf32, #tpu.memory_space<vmem>>, vector<4x15x15xf32>
    tpu.vector_store %arg2[%c0_1, %c0_2, %c0_3], %0 {strides = array<i32>} : memref<4x15x15xf32, #tpu.memory_space<vmem>>, vector<4x15x15xf32>,
    return
  }
  func.func @transform_0(%arg0: i32) -> (i32, i32, i32) {
    %c0_i32 = arith.constant 0 : i32
    %c0_i32_0 = arith.constant 0 : i32
    %c0_i32_1 = arith.constant 0 : i32
    return %arg0, %c0_i32, %c0_i32_0 : i32, i32, i32
  }
  func.func @transform_1(%arg0: i32) -> (i32, i32, i32) {
    %c0_i32 = arith.constant 0 : i32
    %c0_i32_0 = arith.constant 0 : i32
    %c0_i32_1 = arith.constant 0 : i32
    return %arg0, %c0_i32, %c0_i32_0 : i32, i32, i32
  }
}

</mosaic_0001>

<llo_original>
// kernel: tpu_custom_call.1
$region0: #{tpu_custom_call.1}
  #allocation0 [shape = 'u32[]', space=smem, size = 0x4, offset = 0x4, fixed_abs, tag = 'smem constant byte address 0x4 - core index']
  #allocation1 [shape = 'u32[144,128]{1,0:T(1,128)}', space=vmem, size = 0x12000, scoped, tag = 'internal scratch']
  %s0 = inlined_call_operand.hbm [shape: f32[8,16,16], index: 0, kind: input, shape index: {}]
  %s1 = inlined_call_operand.vmem [shape: f32[8,15,15], index: 1, kind: output, shape index: {}]
  %s2 = sld [smem:[#allocation0]]
  $region41: #{tpu_custom_call.1} parent=0
    _
  %s4 = ssub.s32 1, %s2
  %s5 = scalar_select 0, %s4, %s2
  $region1: #{tpu_custom_call.1} parent=0
    #allocation2 [shape = 'u8[65536]{0}', space=vmem, size = 0x10000, scoped, tag = 'input window, operand 0']
    #allocation3 [shape = 's32[2]{0}', space=sflag, size = 0x8, scoped, tag = 'scoped memory for tpu_custom_call.1']
    %6 = vsyncpa [#allocation3], 0
    %s7 = scalar_lea.sflag [#allocation3], 1
    %8 = vsyncpa %s7, 0
    loop: start=0, step=1, limit=4
    $region2: #{tpu_custom_call.1} parent=1 // loop_pre_header
      _
    $region3: #{tpu_custom_call.1} parent=1 // loop_header
      %s10 = sphi 0, %s14
      %p11 = scmp.ge.s32.totalorder %s10, 4
      %s20 = sphi 0, %s22
      %s23 = sphi 0, %s20
      %s24 = sphi 0, %s23
      %s40 = sphi 0, %s24
      %s46 = sphi 0, %s48
      %s49 = sphi 0, %s46
      %s50 = sphi 0, %s49
      %s66 = sphi 0, %s50
    $region4: #{tpu_custom_call.1} parent=1 // loop_header_branch
      %13 = sbr.rel (%p11) target = $region8
    $region5: #{tpu_custom_call.1} parent=1 // loop_body
      %s15 = ssub.s32 %s10, 1
      %s16 = ssub.s32 %s10, 2
      %s17 = sadd.s32 %s10, 1
      %s18 = ssub.s32 %s10, %s17
      %p19 = scmp.eq.s32.totalorder %s18, 0
      %s21 = sadd.s32 %s20, 1
      %s22 = scalar_select %p19, %s20, %s21
      %p25 = pneg %p19
      %p26 = scmp.eq.s32.totalorder %s10, 1
      %p27 = por %p25, %p26
      %p28 = scmp.ne.s32.totalorder %s20, %s23
      %p29 = scmp.eq.s32.totalorder %s10, 0
      %p30 = por %p28, %p29
      %p31 = scmp.ne.s32.totalorder %s20, %s23
      %p32 = scmp.eq.s32.totalorder %s15, 1
      %p33 = por %p31, %p32
      %p34 = scmp.ne.s32.totalorder %s23, %s24
      %p35 = scmp.eq.s32.totalorder %s15, 0
      %p36 = por %p34, %p35
      %p37 = scmp.ne.s32.totalorder %s23, %s24
      %p38 = scmp.eq.s32.totalorder %s16, 1
      %p39 = por %p37, %p38
      %p41 = scmp.ne.s32.totalorder %s24, %s40
      %p42 = scmp.eq.s32.totalorder %s16, 0
      %p43 = por %p41, %p42
      %s44 = ssub.s32 %s10, %s17
      %p45 = scmp.eq.s32.totalorder %s44, 0
      %s47 = sadd.s32 %s46, 1
      %s48 = scalar_select %p45, %s46, %s47
      %p51 = pneg %p45
      %p52 = scmp.eq.s32.totalorder %s10, 1
      %p53 = por %p51, %p52
      %p54 = scmp.ne.s32.totalorder %s46, %s49
      %p55 = scmp.eq.s32.totalorder %s10, 0
      %p56 = por %p54, %p55
      %p57 = scmp.ne.s32.totalorder %s46, %s49
      %p58 = scmp.eq.s32.totalorder %s15, 1
      %p59 = por %p57, %p58
      %p60 = scmp.ne.s32.totalorder %s49, %s50
      %p61 = scmp.eq.s32.totalorder %s15, 0
      %p62 = por %p60, %p61
      %p63 = scmp.ne.s32.totalorder %s49, %s50
      %p64 = scmp.eq.s32.totalorder %s16, 1
      %p65 = por %p63, %p64
      %p67 = scmp.ne.s32.totalorder %s50, %s66
      %p68 = scmp.eq.s32.totalorder %s16, 0
      %p69 = por %p67, %p68
      %p70 = scmp.le.s32.totalorder 1, %s10
      %p71 = scmp.lt.s32.totalorder %s10, 3
      %p72 = pnand %p70, %p71
      %p73 = pneg %p72
      // Predicated region
      $region9: #{tpu_custom_call.1} parent=5 // pred_check
        _
      $region10: #{tpu_custom_call.1} parent=5 // pred_check_branch
        %75 = sbr.rel (%p72) target = $region12
      $region11: #{tpu_custom_call.1} parent=5 // pred_region
        %s76 = ssub.s32 %s10, 1
      $region12: #{tpu_custom_call.1} parent=5 // pred_fallthru
        _
      %p77 = scmp.lt.s32.totalorder %s10, 2
      // Predicated region
      $region13: #{tpu_custom_call.1} parent=5 // pred_check
        %p78 = pneg %p77
      $region14: #{tpu_custom_call.1} parent=5 // pred_check_branch
        %80 = sbr.rel (%p78) target = $region16
      $region15: #{tpu_custom_call.1} parent=5 // pred_region
        // Predicated region
        $region17: #{tpu_custom_call.1} parent=15 // pred_check
          %p81 = pneg %p30
        $region18: #{tpu_custom_call.1} parent=15 // pred_check_branch
          %83 = sbr.rel (%p81) target = $region20
        $region19: #{tpu_custom_call.1} parent=15 // pred_region
          %s84 = sand.u32 %s20, 1
          %s85 = scalar_lea.sflag [#allocation3], %s84
          %s86 = sand.u32 %s20, 1
          %s87 = smul.addr %s86, 64
          %s88 = scalar_lea.vmem [#allocation2], %s87
          %s89 = smul.u32 4, %s10
          %s91 = ssub.s32 1024, 1024
          %92 = vsyncadd %s85, %s91
          %s93 = smul.addr %s89, 2
          %s94 = smul.addr %s93, 128
          %s95 = scalar_lea.hbm %s0, %s94
          %s96 = sshll.u32 %s88, 4
          %s97 = int_to_ptr.vmem [resolvable:$true] %s96
          %102 = dma.hbm_to_vmem [thread:$0]  %s95, 1024, %s97, %s85, 128, 128, 8
        $region20: #{tpu_custom_call.1} parent=15 // pred_fallthru
          _
      $region16: #{tpu_custom_call.1} parent=5 // pred_fallthru
        _
      %p103 = scmp.le.s32.totalorder 1, %s10
      %p104 = scmp.lt.s32.totalorder %s10, 3
      %p105 = pnand %p103, %p104
      %p106 = pneg %p105
      // Predicated region
      $region21: #{tpu_custom_call.1} parent=5 // pred_check
        _
      $region22: #{tpu_custom_call.1} parent=5 // pred_check_branch
        %108 = sbr.rel (%p105) target = $region24
      $region23: #{tpu_custom_call.1} parent=5 // pred_region
        %s109 = ssub.s32 %s10, 1
        %s110 = sand.u32 %s23, 1
        %s111 = scalar_lea.sflag [#allocation3], %s110
        %s112 = sand.u32 %s23, 1
        %s113 = smul.addr %s112, 64
        %s114 = scalar_lea.vmem [#allocation2], %s113
        // Predicated region
        $region25: #{tpu_custom_call.1} parent=23 // pred_check
          %p115 = pneg %p36
        $region26: #{tpu_custom_call.1} parent=23 // pred_check_branch
          %117 = sbr.rel (%p115) target = $region28
        $region27: #{tpu_custom_call.1} parent=23 // pred_region
          %118 = dma.done %s111, 1024
        $region28: #{tpu_custom_call.1} parent=23 // pred_fallthru
          _
        %s119 = sand.u32 %s23, 1
        %s120 = scalar_lea.sflag [#allocation3], %s119
        %s121 = sand.u32 %s23, 1
        %s122 = smul.addr %s121, 64
        %s123 = scalar_lea.vmem [#allocation2], %s122
        %p124 = pneg %p36
        %p125 = pneg %p33
        %p126 = pneg %p62
        %p127 = pneg %p59
        %s128 = smul.u32 4, %s15
        %p129 = scmp.lt.s32.totalorder %s128, 7
        %s130 = scalar_select %p129, %s128, 7
        %s131 = smul.addr %s130, 2
        %s132 = smul.addr %s131, 8
        %s133 = scalar_lea.vmem %s1, %s132
        %s134 = smul.u32 4, %s15
        %s135 = smul.u32 4, %s15
        %p136 = scmp.lt.s32.totalorder %s135, 7
        %s137 = scalar_select %p136, %s135, 7
        %s138 = smul.addr %s137, 2
        %s139 = smul.addr %s138, 8
        %s140 = scalar_lea.vmem %s1, %s139
        %s141 = smul.u32 4, %s15
        %v142 = vld [vmem:[%s114 + $0x1] sm:$0xff]
        %v143 = vld [vmem:[%s114 + $0x9] sm:$0x7f]
        %v144 = vld [vmem:[%s114 + $0x11] sm:$0xff]
        %v145 = vld [vmem:[%s114 + $0x19] sm:$0x7f]
        %v146 = vld [vmem:[%s114 + $0x21] sm:$0xff]
        %v147 = vld [vmem:[%s114 + $0x29] sm:$0x7f]
        %v148 = vld [vmem:[%s114 + $0x31] sm:$0xff]
        %v149 = vld [vmem:[%s114 + $0x39] sm:$0x7f]
        %158 = vrot.lane.b32.xlu0 %v142, 127
        %v159 = vpop.permute.xlu0 %158
        %160 = vrot.lane.b32.xlu0 %v143, 127
        %v161 = vpop.permute.xlu0 %160
        %162 = vrot.lane.b32.xlu0 %v144, 127
        %v163 = vpop.permute.xlu0 %162
        %164 = vrot.lane.b32.xlu0 %v145, 127
        %v165 = vpop.permute.xlu0 %164
        %166 = vrot.lane.b32.xlu0 %v146, 127
        %v167 = vpop.permute.xlu0 %166
        %168 = vrot.lane.b32.xlu0 %v147, 127
        %v169 = vpop.permute.xlu0 %168
        %170 = vrot.lane.b32.xlu0 %v148, 127
        %v171 = vpop.permute.xlu0 %170
        %172 = vrot.lane.b32.xlu0 %v149, 127
        %v173 = vpop.permute.xlu0 %172
        %vm182 = vcmask 121856
        %183 = vst.msk [vmem:[%s140] sm:$0xff] %vm182, %v159
        %vm184 = vcmask 120832
        %185 = vst.msk [vmem:[%s140 + $0x8] sm:$0x7f] %vm184, %v161
        %186 = vst.msk [vmem:[%s140 + $0x10] sm:$0xff] %vm182, %v163
        %187 = vst.msk [vmem:[%s140 + $0x18] sm:$0x7f] %vm184, %v165
        %188 = vst.msk [vmem:[%s140 + $0x20] sm:$0xff] %vm182, %v167
        %189 = vst.msk [vmem:[%s140 + $0x28] sm:$0x7f] %vm184, %v169
        %190 = vst.msk [vmem:[%s140 + $0x30] sm:$0xff] %vm182, %v171
        %191 = vst.msk [vmem:[%s140 + $0x38] sm:$0x7f] %vm184, %v173
        %s192 = smul.u32 4, %s15
        %p193 = scmp.lt.s32.totalorder %s192, 7
        %s194 = scalar_select %p193, %s192, 7
        %s195 = smul.addr %s194, 2
        %s196 = smul.addr %s195, 8
        %s197 = scalar_lea.vmem %s1, %s196
        // Predicated region
        $region29: #{tpu_custom_call.1} parent=23 // pred_check
          %p198 = pneg %p59
        $region30: #{tpu_custom_call.1} parent=23 // pred_check_branch
          %200 = sbr.rel (%p198) target = $region32
        $region31: #{tpu_custom_call.1} parent=23 // pred_region
          %s201 = smul.u32 4, %s15
        $region32: #{tpu_custom_call.1} parent=23 // pred_fallthru
          _
      $region24: #{tpu_custom_call.1} parent=5 // pred_fallthru
        _
      %p202 = scmp.le.s32.totalorder 2, %s10
      // Predicated region
      $region33: #{tpu_custom_call.1} parent=5 // pred_check
        %p203 = pneg %p202
      $region34: #{tpu_custom_call.1} parent=5 // pred_check_branch
        %205 = sbr.rel (%p203) target = $region36
      $region35: #{tpu_custom_call.1} parent=5 // pred_region
        %s206 = ssub.s32 %s10, 2
        // Predicated region
        $region37: #{tpu_custom_call.1} parent=35 // pred_check
          %p207 = pneg %p65
        $region38: #{tpu_custom_call.1} parent=35 // pred_check_branch
          %209 = sbr.rel (%p207) target = $region40
        $region39: #{tpu_custom_call.1} parent=35 // pred_region
          %s210 = smul.u32 4, %s16
          %p211 = scmp.lt.s32.totalorder %s210, 7
          %s212 = scalar_select %p211, %s210, 7
          %s213 = smul.addr %s212, 2
          %s214 = smul.addr %s213, 8
          %s215 = scalar_lea.vmem %s1, %s214
        $region40: #{tpu_custom_call.1} parent=35 // pred_fallthru
          _
      $region36: #{tpu_custom_call.1} parent=5 // pred_fallthru
        _
    $region6: #{tpu_custom_call.1} parent=1 // loop_footer
      %s14 = sadd.s32 1, %s10
    $region7: #{tpu_custom_call.1} parent=1 // loop_footer_branch
      %9 = sbr.rel target = $region3
    $region8: #{tpu_custom_call.1} parent=1 // loop_exit
      _
    %216 = vsyncpa [#allocation3], 1
    %s217 = scalar_lea.sflag [#allocation3], 1
    %218 = vsyncpa %s217, 1

</llo_original>
